<compile_context>
chip_gen: v5e
topology: v5e:2x2
jax: 0.10.0
libtpu: 0.0.40
codegen_flags: <defaults>
</compile_context>

<pallas_src>
import functools

import jax
import jax.numpy as jnp
from jax.experimental import pallas as pl
from jax.experimental.pallas import tpu as pltpu


def _latent_map_kernel(x_ref, wb_ref, o_ref):
    # x_ref : (B, H)        -- full title_context, resident in VMEM
    # wb_ref: (H+1, L*Z)    -- rows [0:H] = fused weights, row [H] = fused bias
    # o_ref : (B, L*Z)      -- single lane-dense output slab
    H = x_ref.shape[1]
    w = wb_ref[:H, :]          # static, sublane-aligned slice (H multiple of 8)
    b = wb_ref[H:H + 1, :]     # (1, L*Z), broadcasts over the B rows
    y = jnp.dot(x_ref[...], w, preferred_element_type=jnp.float32)
    o_ref[...] = (y + b).astype(o_ref.dtype)


def pack_latent_map_params(weights, biases):
    """One-time parameter transform (do this at model init, NOT per forward).

    weights: [L, H, Z]  (layer l maps h -> z, i.e. already W_l.T vs PyTorch's [Z, H])
    biases : [L, Z]
    returns: [H+1, L*Z] packed slab; flattening is l-major / z-minor, which
             matches the final (B, L*Z) -> (B, L, Z) reshape in latent_map.
    """
    L, H, Z = weights.shape
    w2 = jnp.transpose(weights, (1, 0, 2)).reshape(H, L * Z)   # (H, L*Z)
    b2 = biases.reshape(1, L * Z)                              # (1, L*Z)
    return jnp.concatenate([w2, b2], axis=0)                   # (H+1, L*Z)


def latent_map(title_context, packed_wb, n_layers):
    """title_context: [B, H], packed_wb: [H+1, L*Z] (from pack_latent_map_params)
    -> [B, n_layers, Z]."""
    B, H = title_context.shape
    HP1, LZ = packed_wb.shape
    assert HP1 == H + 1 and LZ % n_layers == 0
    Z = LZ // n_layers

    itemsize = 4  # f32 everywhere
    cost = pl.CostEstimate(
        flops=2 * B * H * LZ,
        transcendentals=0,
        bytes_accessed=itemsize * (B * H + (H + 1) * LZ + B * LZ),
    )

    out_flat = pl.pallas_call(
        _latent_map_kernel,
        out_shape=jax.ShapeDtypeStruct((B, LZ), jnp.float32),
        # No grid: single un-pipelined invocation, whole arrays resident in VMEM
        # (no per-step bookkeeping, no double-buffering of these tiny operands).
        in_specs=[
            pl.BlockSpec(memory_space=pltpu.MemorySpace.VMEM),   # x
            pl.BlockSpec(memory_space=pltpu.MemorySpace.VMEM),   # packed W|b
        ],
        out_specs=pl.BlockSpec(memory_space=pltpu.MemorySpace.VMEM),
        cost_estimate=cost,
    )(title_context, packed_wb)

    # Free contiguous reshape back to PyTorch's [B, L, Z] stacking convention.
    return out_flat.reshape(B, n_layers, Z)


if __name__ == "__main__":
    # config: n_topic_num = 4, decoder_hidden_size = 32, n_z = 16
    B, H, Z, L = 2, 32, 16, 4

    key = jax.random.PRNGKey(0)
    kx, kw, kb = jax.random.split(key, 3)

    title_context = jax.random.normal(kx, (B, H), dtype=jnp.float32)
    # deterministic synthetic parameters (stand-in for nn.Linear init),
    # stored as [L, H, Z] (already transposed vs. PyTorch's [Z, H]).
    weights = jax.random.normal(kw, (L, H, Z), dtype=jnp.float32) * 0.1
    biases = jax.random.normal(kb, (L, Z), dtype=jnp.float32) * 0.1

    # One-time packing (belongs in model init / param loading, outside the hot path).
    packed_wb = jax.block_until_ready(pack_latent_map_params(weights, biases))

    run = jax.jit(functools.partial(latent_map, n_layers=L))
    topics = run(title_context, packed_wb)
    topics = jax.block_until_ready(topics)

    # sanity check against a pure-JAX reference of the PyTorch forward
    ref = jnp.einsum("bh,lhz->blz", title_context, weights) + biases[None, :, :]
    assert topics.shape == (B, L, Z)
    assert jnp.allclose(topics, ref, atol=1e-5, rtol=1e-5)

    print("KERNEL_OK")
</pallas_src>

<mosaic_0001>
module attributes {stable_mosaic.version = 11 : i64} {
  func.func @_latent_map_kernel(%arg0: memref<2x32xf32, #tpu.memory_space<vmem>>, %arg1: memref<33x64xf32, #tpu.memory_space<vmem>>, %arg2: memref<2x64xf32, #tpu.memory_space<vmem>>) attributes {dimension_semantics = [], scalar_prefetch = 0 : i64, scratch_operands = 0 : i64, tpu.core_type = #tpu.core_type<tc>} {
    %c0 = arith.constant 0 : index
    %c0_0 = arith.constant 0 : index
    %0 = vector.load %arg1[%c0, %c0_0] : memref<33x64xf32, #tpu.memory_space<vmem>>, vector<32x64xf32>
    %c32 = arith.constant 32 : index
    %c0_1 = arith.constant 0 : index
    %1 = vector.load %arg1[%c32, %c0_1] : memref<33x64xf32, #tpu.memory_space<vmem>>, vector<1x64xf32>
    %c0_2 = arith.constant 0 : index
    %c0_3 = arith.constant 0 : index
    %2 = vector.load %arg0[%c0_2, %c0_3] : memref<2x32xf32, #tpu.memory_space<vmem>>, vector<2x32xf32>
    %cst = arith.constant dense<0.000000e+00> : vector<2x64xf32>
    %3 = tpu.matmul %2, %0, %cst {dimension_numbers = #tpu.dot_dimension_numbers<[1], [0], [0], [1], [0, 0, 1, 1], [], []>} : vector<2x32xf32>, vector<32x64xf32>, vector<2x64xf32> -> vector<2x64xf32>
    %4 = vector.broadcast %1 : vector<1x64xf32> to vector<2x64xf32>
    %5 = arith.addf %3, %4 : vector<2x64xf32>
    %c0_4 = arith.constant 0 : index
    %c0_5 = arith.constant 0 : index
    %6 = vector.load %arg2[%c0_4, %c0_5] : memref<2x64xf32, #tpu.memory_space<vmem>>, vector<2x64xf32>
    tpu.vector_store %arg2[%c0_4, %c0_5], %5 {strides = array<i32>} : memref<2x64xf32, #tpu.memory_space<vmem>>, vector<2x64xf32>,
    return
  }
}

</mosaic_0001>

<llo_original>
// kernel: latent_map.1
$region0: #{latent_map.1}
  #allocation0 [shape = 'u32[]', space=smem, size = 0x4, offset = 0x4, fixed_abs, tag = 'smem constant byte address 0x4 - core index']
  #allocation1 [shape = 'u32[72,128]{1,0:T(1,128)}', space=vmem, size = 0x9000, scoped, tag = 'internal scratch']
  %s0 = inlined_call_operand.hbm [shape: f32[2,32], index: 0, kind: input, shape index: {}]
  %s1 = inlined_call_operand.hbm [shape: f32[33,64], index: 1, kind: input, shape index: {}]
  %s2 = inlined_call_operand.vmem [shape: f32[2,64], index: 2, kind: output, shape index: {}]
  %s3 = sld [smem:[#allocation0]]
  $region26: #{latent_map.1} parent=0
    _
  %s5 = ssub.s32 1, %s3
  %s6 = scalar_select 0, %s5, %s3
  $region1: #{latent_map.1} parent=0
    #allocation2 [shape = 'u8[1024]{0}', space=vmem, size = 0x400, scoped, tag = 'input window, operand 0, single buffered']
    #allocation3 [shape = 's32[1]{0}', space=sflag, size = 0x4, scoped, tag = 'scoped memory for latent_map.1']
    #allocation4 [shape = 'u8[20480]{0}', space=vmem, size = 0x5000, scoped, tag = 'input window, operand 1, single buffered']
    #allocation5 [shape = 's32[1]{0}', space=sflag, size = 0x4, scoped, tag = 'scoped memory for latent_map.1']
    %7 = vsyncpa [#allocation3], 0
    %8 = vsyncpa [#allocation5], 0
    // Predicated region
    $region2: #{latent_map.1} parent=1 // pred_check
      _
    $region3: #{latent_map.1} parent=1 // pred_check_branch
      %10 = sbr.rel (0) target = $region5
    $region4: #{latent_map.1} parent=1 // pred_region
      %12 = vsyncadd [#allocation3], 0
      %s14 = sshll.u32 %s0, 4
      %s15 = int_to_ptr.hbm [resolvable:$true] %s14
      %s16 = sshll.u32 [#allocation2], 4
      %s17 = int_to_ptr.vmem [resolvable:$true] %s16
      %19 = dma.hbm_to_vmem [thread:$0]  %s15, 32, %s17, [#allocation3]
    $region5: #{latent_map.1} parent=1 // pred_fallthru
      _
    // Predicated region
    $region6: #{latent_map.1} parent=1 // pred_check
      _
    $region7: #{latent_map.1} parent=1 // pred_check_branch
      %21 = sbr.rel (0) target = $region9
    $region8: #{latent_map.1} parent=1 // pred_region
      %23 = vsyncadd [#allocation5], 0
      %s24 = sshll.u32 %s1, 4
      %s25 = int_to_ptr.hbm [resolvable:$true] %s24
      %s26 = sshll.u32 [#allocation4], 4
      %s27 = int_to_ptr.vmem [resolvable:$true] %s26
      %32 = dma.hbm_to_vmem [thread:$0]  %s25, 640, %s27, [#allocation5], 128, 128, 8
    $region9: #{latent_map.1} parent=1 // pred_fallthru
      _
    // Predicated region
    $region10: #{latent_map.1} parent=1 // pred_check
      _
    $region11: #{latent_map.1} parent=1 // pred_check_branch
      %34 = sbr.rel (0) target = $region13
    $region12: #{latent_map.1} parent=1 // pred_region
      %36 = dma.done [#allocation3], 32
    $region13: #{latent_map.1} parent=1 // pred_fallthru
      _
    // Predicated region
    $region14: #{latent_map.1} parent=1 // pred_check
      _
    $region15: #{latent_map.1} parent=1 // pred_check_branch
      %38 = sbr.rel (0) target = $region17
    $region16: #{latent_map.1} parent=1 // pred_region
      %40 = dma.done [#allocation5], 640
    $region17: #{latent_map.1} parent=1 // pred_fallthru
      _
    %v41 = vld [vmem:[#allocation4] sm:$0xff]
    %v42 = vld [vmem:[#allocation4 + $0x8] sm:$0xff]
    %v43 = vld [vmem:[#allocation4 + $0x10] sm:$0xff]
    %v44 = vld [vmem:[#allocation4 + $0x18] sm:$0xff]
    %v45 = vld [vmem:[#allocation4 + $0x20] sm:$0x1]
    %v46 = vld [vmem:[#allocation2] sm:$0x3]
    %v47 = vperm.slane %v45, 0
    %vm48 = vcmask 261120
    %v50 = vsel %vm48, %v46, 0
    %52 = vmatpush.msra.mxu0 0.0
    %53 = vmatpush.msra.mxu0 0.0
    %54 = vmatpush.msra.mxu0 0.0
    %55 = vmatpush.msra.mxu0 0.0
    %56 = vmatpush.msra.mxu0 0.0
    %57 = vmatpush.msra.mxu0 0.0
    %58 = vmatpush.msra.mxu0 0.0
    %59 = vmatpush.msra.mxu0 0.0
    %60 = vmatpush.msra.mxu0 0.0
    %61 = vmatpush.msra.mxu0 0.0
    %62 = vmatpush.msra.mxu0 0.0
    %63 = vmatpush.msra.mxu0 0.0
    %64 = vmatpush.msra.mxu0 %v44
    %65 = vmatpush.msra.mxu0 %v43
    %66 = vmatpush.msra.mxu0 %v42
    %67 = vmatpush.msra.mxu0 %v41
    %68 = vmatmul.f32.gmra.mxu0 %v50
    %v69 = vpop.f32.mrf.mxu0
    %v70 = vadd.f32 %v47, %v69
    %71 = vdwg.mxu0
    %vm72 = vcmask 517120
    %73 = vst.msk [vmem:[%s2] sm:$0x3] %vm72, %v70
    // Predicated region
    $region18: #{latent_map.1} parent=1 // pred_check
      _
    $region19: #{latent_map.1} parent=1 // pred_check_branch
      %75 = sbr.rel (0) target = $region21
    $region20: #{latent_map.1} parent=1 // pred_region
      _
    $region21: #{latent_map.1} parent=1 // pred_fallthru
      _
    // Predicated region
    $region22: #{latent_map.1} parent=1 // pred_check
      _
    $region23: #{latent_map.1} parent=1 // pred_check_branch
      %77 = sbr.rel (0) target = $region25
    $region24: #{latent_map.1} parent=1 // pred_region
      _
    $region25: #{latent_map.1} parent=1 // pred_fallthru
      _
    %78 = vsyncpa [#allocation3], 1
    %79 = vsyncpa [#allocation5], 1

</llo_original>
